<compile_context>
chip_gen: v7x
topology: tpu7x:2x2x1
jax: 0.10.0
libtpu: 0.0.40
codegen_flags: <defaults>
</compile_context>

<pallas_src>
import functools
import math

import jax
import jax.numpy as jnp
from jax.experimental import pallas as pl
from jax.experimental.pallas import tpu as pltpu

LN_EPS = 1e-5

# batched matmul dimension numbers (head axis leads as the batch dim)
_DN_AB = (((2,), (1,)), ((0,), (0,)))    # (H, M, K) x (H, K, N)   -> (H, M, N)
_DN_ABT = (((2,), (2,)), ((0,), (0,)))   # (H, M, K) x (H, N, K)   -> (H, M, N)


# ----------------------------------------------------------------------------
# Pallas kernels
# ----------------------------------------------------------------------------
def _layer_norm(x, w, b):
    """LayerNorm over the channel (last) axis, f32 math."""
    mu = jnp.mean(x, axis=-1, keepdims=True)
    xc = x - mu
    var = jnp.mean(xc * xc, axis=-1, keepdims=True)
    return xc * jax.lax.rsqrt(var + LN_EPS) * w + b


def _embd_kernel(x_ref, pe_ref, m_ref, w_ref, o_ref):
    """(x @ W + pe) * mask  ==  MaskedConv1D(k=1) + masked positional encoding."""
    x = x_ref[0].astype(jnp.bfloat16)                      # (T, Cin)
    y = jnp.dot(x, w_ref[...], preferred_element_type=jnp.float32)
    y = (y + pe_ref[...]) * m_ref[0]
    o_ref[0] = y.astype(o_ref.dtype)


def _block_kernel(*refs, n_heads, separate_q):
    """One TransformerEncoderBlock (pre-LN masked MHA + masked GELU MLP).

    Grid is (batch, q_tile).  Kernel views:
      x_q:   (TQ, C)  query / skip rows (separate input for stride!=1 / top-down,
                       otherwise sliced from x_kv)
      x_kv:  (T, C)   full key/value sequence
      mkc:   (T, 1)   key mask (column form, masks V)
      mkr:   (1, T)   key mask (row form, masks scores)
      mq:    (TQ, 1)  query / output mask
    """
    if separate_q:
        (xq_ref, xkv_ref, mkc_ref, mkr_ref, mq_ref,
         ln1w_ref, ln1b_ref, wq_ref, wk_ref, wv_ref, wo_ref,
         ln2w_ref, ln2b_ref, w1_ref, w2_ref, o_ref) = refs
    else:
        (xkv_ref, mkc_ref, mkr_ref, mq_ref,
         ln1w_ref, ln1b_ref, wq_ref, wk_ref, wv_ref, wo_ref,
         ln2w_ref, ln2b_ref, w1_ref, w2_ref, o_ref) = refs
        xq_ref = None

    T = xkv_ref.shape[1]
    TQ = o_ref.shape[1]
    C = o_ref.shape[2]
    H = n_heads
    dh = C // H
    scale = 1.0 / math.sqrt(dh)

    ln1w, ln1b = ln1w_ref[...], ln1b_ref[...]
    x_kv = xkv_ref[0].astype(jnp.float32)                  # (T, C)
    xn_kv = _layer_norm(x_kv, ln1w, ln1b)

    if separate_q:
        x_q = xq_ref[0].astype(jnp.float32)                # (TQ, C)
        xn_q = _layer_norm(x_q, ln1w, ln1b)
    elif TQ == T:
        x_q, xn_q = x_kv, xn_kv                            # stride 1, untiled
    else:
        start = pl.multiple_of(pl.program_id(1) * TQ, TQ)  # stride 1, q-tiled
        x_q = xkv_ref[0, pl.ds(start, TQ), :].astype(jnp.float32)
        xn_q = _layer_norm(x_q, ln1w, ln1b)

    mkc = mkc_ref[0]                                       # (T, 1) f32
    key_valid = mkr_ref[0] > 0.0                           # (1, T) bool
    mq = mq_ref[0]                                         # (TQ, 1) f32

    # ---- attention (heads batched on the leading axis; no per-head slicing) ----
    xq_b = jnp.broadcast_to(xn_q.astype(jnp.bfloat16)[None], (H, TQ, C))
    xkv_b = jnp.broadcast_to(xn_kv.astype(jnp.bfloat16)[None], (H, T, C))

    Qh = jax.lax.dot_general(xq_b, wq_ref[...], _DN_AB,
                             preferred_element_type=jnp.float32)   # (H, TQ, dh)
    Kh = jax.lax.dot_general(xkv_b, wk_ref[...], _DN_AB,
                             preferred_element_type=jnp.float32)   # (H, T, dh)
    Vh = jax.lax.dot_general(xkv_b, wv_ref[...], _DN_AB,
                             preferred_element_type=jnp.float32)   # (H, T, dh)
    Vh = Vh * mkc[None]                                            # mask V only

    sc = jax.lax.dot_general((Qh * scale).astype(jnp.bfloat16),
                             Kh.astype(jnp.bfloat16), _DN_ABT,
                             preferred_element_type=jnp.float32)   # (H, TQ, T)
    sc = jnp.where(key_valid[None], sc, jnp.float32(-1e30))
    sc = sc - jnp.max(sc, axis=-1, keepdims=True)
    p = jnp.exp(sc)
    p = p * pl.reciprocal(jnp.sum(p, axis=-1, keepdims=True), approx=True)

    ctx = jax.lax.dot_general(p.astype(jnp.bfloat16), Vh.astype(jnp.bfloat16),
                              _DN_AB, preferred_element_type=jnp.float32)  # (H, TQ, dh)
    attn_h = jax.lax.dot_general(ctx.astype(jnp.bfloat16), wo_ref[...], _DN_AB,
                                 preferred_element_type=jnp.float32)       # (H, TQ, C)
    attn = jnp.sum(attn_h, axis=0)                                         # (TQ, C)

    x1 = (x_q + attn) * mq

    # ---- MLP sub-block -------------------------------------------------------
    xn2 = _layer_norm(x1, ln2w_ref[...], ln2b_ref[...])
    # TODO(synk): PyTorch nn.GELU defaults to the exact erf form; tanh approx used here.
    h1 = jax.nn.gelu(jnp.dot(xn2.astype(jnp.bfloat16), w1_ref[...],
                             preferred_element_type=jnp.float32), approximate=True)
    mlp = jnp.dot(h1.astype(jnp.bfloat16), w2_ref[...],
                  preferred_element_type=jnp.float32)
    o_ref[0] = (x1 + mlp * mq).astype(o_ref.dtype)


# ----------------------------------------------------------------------------
# pallas_call wrappers
# ----------------------------------------------------------------------------
def _full_spec_1(a):
    zeros = (0,) * a.ndim
    return pl.BlockSpec(a.shape, lambda b, _z=zeros: _z)


def _full_spec_2(a):
    zeros = (0,) * a.ndim
    return pl.BlockSpec(a.shape, lambda b, q, _z=zeros: _z)


def _run_embd(x, pe_t, m_col, w):
    B, T, Cin = x.shape
    C = w.shape[1]
    return pl.pallas_call(
        _embd_kernel,
        out_shape=jax.ShapeDtypeStruct((B, T, C), jnp.bfloat16),
        grid=(B,),
        in_specs=[
            pl.BlockSpec((1, T, Cin), lambda b: (b, 0, 0)),
            _full_spec_1(pe_t),
            pl.BlockSpec((1, T, 1), lambda b: (b, 0, 0)),
            _full_spec_1(w),
        ],
        out_specs=pl.BlockSpec((1, T, C), lambda b: (b, 0, 0)),
        compiler_params=pltpu.CompilerParams(dimension_semantics=("parallel",)),
    )(x, pe_t, m_col, w)


def _run_block(x_kv, x_q, mk_col, mk_row, mq, p, n_heads):
    """x_kv: (B, T, C) bf16; x_q: (B, Tq, C) bf16 or None (queries == x_kv rows);
    mk_col: (B, T, 1) f32; mk_row: (B, 1, T) f32; mq: (B, Tq, 1) f32."""
    B, T, C = x_kv.shape
    Tq = mq.shape[1]
    separate_q = x_q is not None

    # query tiling: <=128 rows per grid step, K/V stay resident for the full T
    TQ = 128 if (Tq > 128 and Tq % 128 == 0) else Tq
    n_qt = Tq // TQ

    kernel = functools.partial(_block_kernel, n_heads=n_heads, separate_q=separate_q)
    weights = (p["ln1w"], p["ln1b"], p["wq_h"], p["wk_h"], p["wv_h"], p["wo_h"],
               p["ln2w"], p["ln2b"], p["w1"], p["w2"])

    in_specs, args = [], []
    if separate_q:
        in_specs.append(pl.BlockSpec((1, TQ, C), lambda b, q: (b, q, 0)))
        args.append(x_q)
    in_specs += [
        pl.BlockSpec((1, T, C), lambda b, q: (b, 0, 0)),
        pl.BlockSpec((1, T, 1), lambda b, q: (b, 0, 0)),
        pl.BlockSpec((1, 1, T), lambda b, q: (b, 0, 0)),
        pl.BlockSpec((1, TQ, 1), lambda b, q: (b, q, 0)),
    ]
    args += [x_kv, mk_col, mk_row, mq]
    in_specs += [_full_spec_2(w) for w in weights]
    args += list(weights)

    return pl.pallas_call(
        kernel,
        out_shape=jax.ShapeDtypeStruct((B, Tq, C), jnp.bfloat16),
        grid=(B, n_qt),
        in_specs=in_specs,
        out_specs=pl.BlockSpec((1, TQ, C), lambda b, q: (b, q, 0)),
        compiler_params=pltpu.CompilerParams(
            dimension_semantics=("parallel", "parallel")),
    )(*args)


# ----------------------------------------------------------------------------
# Parameter setup / model wrapper (plain JAX glue)
# ----------------------------------------------------------------------------
def get_sinusoid_encoding(seq_len, n_freqs, pe_type=0):
    """Sinusoidal PE of shape (2*n_freqs, seq_len).
    TODO(synk): original helper definition not provided; standard sin/cos table assumed."""
    pos = jnp.arange(seq_len, dtype=jnp.float32)
    i = jnp.arange(n_freqs, dtype=jnp.float32)
    freq = 1.0 / (10000.0 ** (i / jnp.float32(n_freqs)))
    ang = freq[:, None] * pos[None, :]                       # (n_freqs, seq_len)
    if pe_type == 0:
        pe = jnp.concatenate([jnp.sin(ang), jnp.cos(ang)], axis=0)
    else:  # pe_type == 1: interleaved
        pe = jnp.stack([jnp.sin(ang), jnp.cos(ang)], axis=1).reshape(2 * n_freqs, seq_len)
    return pe


class VideoTransformer2Pallas:
    """Pallas/TPU forward for VideoTransformer2 (eval mode: dropout / drop-path = id)."""

    def __init__(self, in_dim, embd_dim, max_seq_len, arch=(2, 5), n_heads=4,
                 pe_type=0, key=None):
        assert len(arch) == 2
        assert embd_dim % n_heads == 0
        assert pe_type in (-1, 0, 1)
        self.in_dim, self.embd_dim = in_dim, embd_dim
        self.max_seq_len = max_seq_len
        self.arch, self.n_heads, self.pe_type = arch, n_heads, pe_type

        C, H = embd_dim, n_heads
        dh = C // H
        n_blocks = arch[0] + arch[1] + 4 + 5
        key = jax.random.PRNGKey(0) if key is None else key
        keys = iter(jax.random.split(key, 1 + 6 * n_blocks))

        def winit(shape):
            return 0.02 * jax.random.normal(next(keys), shape, jnp.float32)

        # embedding 1x1 masked conv (bias zeroed by __init_weights__)
        self.embd_w = (winit((in_dim, C)).astype(jnp.bfloat16)
                       if in_dim != embd_dim else None)

        if pe_type >= 0:
            pe = get_sinusoid_encoding(max_seq_len, embd_dim // 2, pe_type)
            self.pe = pe / (embd_dim ** 0.5)                 # (C, max_seq_len)
        else:
            self.pe = None

        def make_block():
            wq, wk, wv, wo = (winit((C, C)) for _ in range(4))
            w1, w2 = winit((C, 4 * C)), winit((4 * C, C))
            heads_in = lambda w: jnp.transpose(w.reshape(C, H, dh), (1, 0, 2))
            return dict(
                ln1w=jnp.ones((1, C), jnp.float32), ln1b=jnp.zeros((1, C), jnp.float32),
                wq_h=heads_in(wq).astype(jnp.bfloat16),       # (H, C, dh)
                wk_h=heads_in(wk).astype(jnp.bfloat16),
                wv_h=heads_in(wv).astype(jnp.bfloat16),
                wo_h=wo.reshape(H, dh, C).astype(jnp.bfloat16),  # (H, dh, C)
                ln2w=jnp.ones((1, C), jnp.float32), ln2b=jnp.zeros((1, C), jnp.float32),
                w1=w1.astype(jnp.bfloat16), w2=w2.astype(jnp.bfloat16),
            )

        self.stem = [make_block() for _ in range(arch[0])]
        self.branch = [make_block() for _ in range(arch[1])]
        self.stem_batch = [make_block() for _ in range(4)]
        self.fpn_batch = [make_block() for _ in range(5)]
        # fpn_batch strides / directions match the reference constructor:
        # TopDown(4), TopDown(2), stride 1, stride 2, stride 4
        self.fpn_modes = [("up", 4), ("up", 2), ("same", 1), ("down", 2), ("down", 4)]

    # ------------------------------------------------------------------
    def _apply_block(self, x, mask_bool, params, mode, stride):
        """x: (B, T, C) bf16 channels-last; mask_bool: (B, 1, T) bool."""
        mkf = mask_bool.astype(jnp.float32)
        mk_row = mkf                                          # (B, 1, T)
        mk_col = jnp.transpose(mkf, (0, 2, 1))                # (B, T, 1)
        if mode == "same":
            x_q, out_mask = None, mask_bool
        elif mode == "down":
            # TODO(synk): helper class not provided; strided selection assumed for the
            # query/skip down-sampling path (ActionFormer variants use MaxPool1d).
            x_q = x[:, ::stride, :]
            out_mask = mask_bool[:, :, ::stride]
        else:  # "up": TransformerEncoderBlockTopDown, nearest-neighbour upsample assumed
            # TODO(synk): TransformerEncoderBlockTopDown definition not provided.
            x_q = jnp.repeat(x, stride, axis=1)
            out_mask = jnp.repeat(mask_bool, stride, axis=2)
        mq = jnp.transpose(out_mask.astype(jnp.float32), (0, 2, 1))   # (B, Tq, 1)
        y = _run_block(x, x_q, mk_col, mk_row, mq, params, self.n_heads)
        return y, out_mask

    # ------------------------------------------------------------------
    def __call__(self, x, mask):
        """x: (B, Cin, T) float32; mask: (B, 1, T) bool (True = valid)."""
        B, Cin, T = x.shape
        # TODO(synk): PE linear interpolation for T > max_seq_len (eval) not implemented.
        assert T <= self.max_seq_len
        xt = jnp.transpose(x, (0, 2, 1)).astype(jnp.float32)          # (B, T, Cin)
        m_col = jnp.transpose(mask.astype(jnp.float32), (0, 2, 1))    # (B, T, 1)

        if self.pe is not None:
            pe_t = jnp.transpose(self.pe[:, :T]).astype(jnp.float32)  # (T, C)
        else:
            pe_t = jnp.zeros((T, self.embd_dim), jnp.float32)

        if self.embd_w is not None:
            cur = _run_embd(xt, pe_t, m_col, self.embd_w)             # (B, T, C) bf16
        else:
            cur = (xt + pe_t[None] * m_col).astype(jnp.bfloat16)
        cur_mask = mask

        for p in self.stem:
            cur, cur_mask = self._apply_block(cur, cur_mask, p, "same", 1)

        # branch (stride 2); reference forward keeps the features captured after
        # branch block idx == 1 (later branch outputs do not affect the result)
        x1, m1 = cur, cur_mask
        for idx, p in enumerate(self.branch):
            x1, m1 = self._apply_block(x1, m1, p, "down", 2)
            if idx == 1:
                cur, cur_mask = x1, m1

        for p in self.stem_batch:
            cur, cur_mask = self._apply_block(cur, cur_mask, p, "same", 1)

        fpn_feats, fpn_masks = (), ()
        for p, (mode, s) in zip(self.fpn_batch, self.fpn_modes):
            f, m = self._apply_block(cur, cur_mask, p, mode, s)
            fpn_feats += (jnp.transpose(f, (0, 2, 1)).astype(jnp.float32),)
            fpn_masks += (m,)
        return fpn_feats, fpn_masks


# ----------------------------------------------------------------------------
if __name__ == "__main__":
    B, Cin, T = 2, 16, 64
    embd_dim, max_seq_len, arch, n_heads = 32, 64, (2, 2), 4

    key = jax.random.PRNGKey(0)
    kx, kp = jax.random.split(key)
    x = jax.random.normal(kx, (B, Cin, T), jnp.float32)
    lengths = jnp.array([T, 3 * T // 4])
    mask = jnp.arange(T)[None, None, :] < lengths[:, None, None]     # (B, 1, T) bool

    model = VideoTransformer2Pallas(Cin, embd_dim, max_seq_len, arch=arch,
                                    n_heads=n_heads, key=kp)
    fpn_feats, fpn_masks = model(x, mask)
    jax.block_until_ready(fpn_feats)

    assert len(fpn_feats) == 5 and len(fpn_masks) == 5
    exp_T = [T, T // 2, T // 4, T // 8, T // 16]
    for f, m, t in zip(fpn_feats, fpn_masks, exp_T):
        assert f.shape == (B, embd_dim, t), f.shape
        assert m.shape == (B, 1, t), m.shape
        assert bool(jnp.all(jnp.isfinite(f)))
    print("KERNEL_OK")
</pallas_src>

<mosaic_0001>
module attributes {stable_mosaic.version = 11 : i64} {
  func.func @_embd_kernel(%arg0: i32, %arg1: memref<1x64x16xf32, #tpu.memory_space<vmem>>, %arg2: memref<64x32xf32, #tpu.memory_space<vmem>>, %arg3: memref<1x64x1xf32, #tpu.memory_space<vmem>>, %arg4: memref<16x32xbf16, #tpu.memory_space<vmem>>, %arg5: memref<1x64x32xbf16, #tpu.memory_space<vmem>>) attributes {dimension_semantics = [#tpu.dimension_semantics<parallel>], iteration_bounds = array<i64: 2>, scalar_prefetch = 0 : i64, scratch_operands = 0 : i64, tpu.core_type = #tpu.core_type<tc>, window_params = [{transform_indices = @transform_0, window_bounds = array<i64: 1, 64, 16>}, {pipeline_mode = #tpu.pipeline_mode<synchronous>, transform_indices = @transform_1, window_bounds = array<i64: 64, 32>}, {transform_indices = @transform_2, window_bounds = array<i64: 1, 64, 1>}, {pipeline_mode = #tpu.pipeline_mode<synchronous>, transform_indices = @transform_3, window_bounds = array<i64: 16, 32>}, {transform_indices = @transform_4, window_bounds = array<i64: 1, 64, 32>}]} {
    %c0 = arith.constant 0 : index
    %c0_0 = arith.constant 0 : index
    %c0_1 = arith.constant 0 : index
    %0 = vector.load %arg1[%c0, %c0_0, %c0_1] : memref<1x64x16xf32, #tpu.memory_space<vmem>>, vector<1x64x16xf32>
    %1 = vector.shape_cast %0 : vector<1x64x16xf32> to vector<64x16xf32>
    %2 = arith.truncf %1 : vector<64x16xf32> to vector<64x16xbf16>
    %c0_2 = arith.constant 0 : index
    %c0_3 = arith.constant 0 : index
    %3 = vector.load %arg4[%c0_2, %c0_3] : memref<16x32xbf16, #tpu.memory_space<vmem>>, vector<16x32xbf16>
    %cst = arith.constant dense<0.000000e+00> : vector<64x32xf32>
    %4 = tpu.matmul %2, %3, %cst {dimension_numbers = #tpu.dot_dimension_numbers<[1], [0], [0], [1], [0, 0, 1, 1], [], []>} : vector<64x16xbf16>, vector<16x32xbf16>, vector<64x32xf32> -> vector<64x32xf32>
    %c0_4 = arith.constant 0 : index
    %c0_5 = arith.constant 0 : index
    %5 = vector.load %arg2[%c0_4, %c0_5] : memref<64x32xf32, #tpu.memory_space<vmem>>, vector<64x32xf32>
    %6 = arith.addf %4, %5 : vector<64x32xf32>
    %c0_6 = arith.constant 0 : index
    %c0_7 = arith.constant 0 : index
    %c0_8 = arith.constant 0 : index
    %7 = vector.load %arg3[%c0_6, %c0_7, %c0_8] : memref<1x64x1xf32, #tpu.memory_space<vmem>>, vector<1x64x1xf32>
    %8 = vector.shape_cast %7 : vector<1x64x1xf32> to vector<64x1xf32>
    %9 = vector.broadcast %8 : vector<64x1xf32> to vector<64x32xf32>
    %10 = arith.mulf %6, %9 : vector<64x32xf32>
    %11 = arith.truncf %10 : vector<64x32xf32> to vector<64x32xbf16>
    %c0_9 = arith.constant 0 : index
    %c0_10 = arith.constant 0 : index
    %c0_11 = arith.constant 0 : index
    %12 = vector.load %arg5[%c0_9, %c0_10, %c0_11] : memref<1x64x32xbf16, #tpu.memory_space<vmem>>, vector<1x64x32xbf16>
    %13 = vector.shape_cast %12 : vector<1x64x32xbf16> to vector<64x32xbf16>
    %14 = vector.shape_cast %11 : vector<64x32xbf16> to vector<1x64x32xbf16>
    tpu.vector_store %arg5[%c0_9, %c0_10, %c0_11], %14 {strides = array<i32>} : memref<1x64x32xbf16, #tpu.memory_space<vmem>>, vector<1x64x32xbf16>,
    return
  }
  func.func @transform_0(%arg0: i32) -> (i32, i32, i32) {
    %c0_i32 = arith.constant 0 : i32
    %c0_i32_0 = arith.constant 0 : i32
    %c0_i32_1 = arith.constant 0 : i32
    return %arg0, %c0_i32, %c0_i32_0 : i32, i32, i32
  }
  func.func @transform_1(%arg0: i32) -> (i32, i32) {
    %c0_i32 = arith.constant 0 : i32
    %c0_i32_0 = arith.constant 0 : i32
    %c0_i32_1 = arith.constant 0 : i32
    return %c0_i32, %c0_i32_0 : i32, i32
  }
  func.func @transform_2(%arg0: i32) -> (i32, i32, i32) {
    %c0_i32 = arith.constant 0 : i32
    %c0_i32_0 = arith.constant 0 : i32
    %c0_i32_1 = arith.constant 0 : i32
    return %arg0, %c0_i32, %c0_i32_0 : i32, i32, i32
  }
  func.func @transform_3(%arg0: i32) -> (i32, i32) {
    %c0_i32 = arith.constant 0 : i32
    %c0_i32_0 = arith.constant 0 : i32
    %c0_i32_1 = arith.constant 0 : i32
    return %c0_i32, %c0_i32_0 : i32, i32
  }
  func.func @transform_4(%arg0: i32) -> (i32, i32, i32) {
    %c0_i32 = arith.constant 0 : i32
    %c0_i32_0 = arith.constant 0 : i32
    %c0_i32_1 = arith.constant 0 : i32
    return %arg0, %c0_i32, %c0_i32_0 : i32, i32, i32
  }
}

</mosaic_0001>

<llo_original>
// kernel: tpu_custom_call.1
$region0: #{tpu_custom_call.1}
  #allocation0 [shape = 'u32[]', space=smem, size = 0x4, offset = 0x4, fixed_abs, tag = 'smem constant byte address 0x4 - core index']
  #allocation1 [shape = 'u32[144,128]{1,0:T(1,128)}', space=vmem, size = 0x12000, scoped, tag = 'internal scratch']
  %s0 = inlined_call_operand.vmem [shape: f32[2,64,16], index: 0, kind: input, shape index: {}]
  %s1 = inlined_call_operand.vmem [shape: f32[64,32], index: 1, kind: input, shape index: {}]
  %s2 = inlined_call_operand.vmem [shape: f32[2,64,1], index: 2, kind: input, shape index: {}]
  %s3 = inlined_call_operand.vmem [shape: bf16[16,32], index: 3, kind: input, shape index: {}]
  %s4 = inlined_call_operand.vmem [shape: bf16[2,64,32], index: 4, kind: output, shape index: {}]
  %s5 = sld [smem:[#allocation0]]
  $region49: #{tpu_custom_call.1} parent=0
    _
  %s7 = ssub.s32 1, %s5
  %s8 = scalar_select 0, %s7, %s5
  loop: start=0, step=1, limit=4
  $region2: #{tpu_custom_call.1} parent=0 // loop_pre_header
    _
  $region3: #{tpu_custom_call.1} parent=0 // loop_header
    %s10 = sphi 0, %s14
    %p11 = scmp.ge.s32.totalorder %s10, 4
    %s20 = sphi 0, %s22
    %s23 = sphi 0, %s20
    %s24 = sphi 0, %s23
    %s40 = sphi 0, %s24
    %s44 = sphi 0, %s44
    %s46 = sphi 0, %s44
    %s47 = sphi 0, %s46
    %s61 = sphi 0, %s47
    %s67 = sphi 0, %s69
    %s70 = sphi 0, %s67
    %s71 = sphi 0, %s70
    %s87 = sphi 0, %s71
    %s91 = sphi 0, %s91
    %s93 = sphi 0, %s91
    %s94 = sphi 0, %s93
    %s108 = sphi 0, %s94
    %s114 = sphi 0, %s116
    %s117 = sphi 0, %s114
    %s118 = sphi 0, %s117
    %s134 = sphi 0, %s118
  $region4: #{tpu_custom_call.1} parent=0 // loop_header_branch
    %13 = sbr.rel (%p11) target = $region8
  $region5: #{tpu_custom_call.1} parent=0 // loop_body
    %s15 = ssub.s32 %s10, 1
    %s16 = ssub.s32 %s10, 2
    %s17 = sadd.s32 %s10, 1
    %s18 = ssub.s32 %s10, %s17
    %p19 = scmp.eq.s32.totalorder %s18, 0
    %s21 = sadd.s32 %s20, 1
    %s22 = scalar_select %p19, %s20, %s21
    %p25 = pneg %p19
    %p26 = scmp.eq.s32.totalorder %s10, 1
    %p27 = por %p25, %p26
    %p28 = scmp.ne.s32.totalorder %s20, %s23
    %p29 = scmp.eq.s32.totalorder %s10, 0
    %p30 = por %p28, %p29
    %p31 = scmp.ne.s32.totalorder %s20, %s23
    %p32 = scmp.eq.s32.totalorder %s15, 1
    %p33 = por %p31, %p32
    %p34 = scmp.ne.s32.totalorder %s23, %s24
    %p35 = scmp.eq.s32.totalorder %s15, 0
    %p36 = por %p34, %p35
    %p37 = scmp.ne.s32.totalorder %s23, %s24
    %p38 = scmp.eq.s32.totalorder %s16, 1
    %p39 = por %p37, %p38
    %p41 = scmp.ne.s32.totalorder %s24, %s40
    %p42 = scmp.eq.s32.totalorder %s16, 0
    %p43 = por %p41, %p42
    %s45 = sadd.s32 %s44, 1
    %p48 = scmp.eq.s32.totalorder %s10, 1
    %p49 = scmp.ne.s32.totalorder %s44, %s46
    %p50 = scmp.eq.s32.totalorder %s10, 0
    %p51 = por %p49, %p50
    %p52 = scmp.ne.s32.totalorder %s44, %s46
    %p53 = scmp.eq.s32.totalorder %s15, 1
    %p54 = por %p52, %p53
    %p55 = scmp.ne.s32.totalorder %s46, %s47
    %p56 = scmp.eq.s32.totalorder %s15, 0
    %p57 = por %p55, %p56
    %p58 = scmp.ne.s32.totalorder %s46, %s47
    %p59 = scmp.eq.s32.totalorder %s16, 1
    %p60 = por %p58, %p59
    %p62 = scmp.ne.s32.totalorder %s47, %s61
    %p63 = scmp.eq.s32.totalorder %s16, 0
    %p64 = por %p62, %p63
    %s65 = ssub.s32 %s10, %s17
    %p66 = scmp.eq.s32.totalorder %s65, 0
    %s68 = sadd.s32 %s67, 1
    %s69 = scalar_select %p66, %s67, %s68
    %p72 = pneg %p66
    %p73 = scmp.eq.s32.totalorder %s10, 1
    %p74 = por %p72, %p73
    %p75 = scmp.ne.s32.totalorder %s67, %s70
    %p76 = scmp.eq.s32.totalorder %s10, 0
    %p77 = por %p75, %p76
    %p78 = scmp.ne.s32.totalorder %s67, %s70
    %p79 = scmp.eq.s32.totalorder %s15, 1
    %p80 = por %p78, %p79
    %p81 = scmp.ne.s32.totalorder %s70, %s71
    %p82 = scmp.eq.s32.totalorder %s15, 0
    %p83 = por %p81, %p82
    %p84 = scmp.ne.s32.totalorder %s70, %s71
    %p85 = scmp.eq.s32.totalorder %s16, 1
    %p86 = por %p84, %p85
    %p88 = scmp.ne.s32.totalorder %s71, %s87
    %p89 = scmp.eq.s32.totalorder %s16, 0
    %p90 = por %p88, %p89
    %s92 = sadd.s32 %s91, 1
    %p95 = scmp.eq.s32.totalorder %s10, 1
    %p96 = scmp.ne.s32.totalorder %s91, %s93
    %p97 = scmp.eq.s32.totalorder %s10, 0
    %p98 = por %p96, %p97
    %p99 = scmp.ne.s32.totalorder %s91, %s93
    %p100 = scmp.eq.s32.totalorder %s15, 1
    %p101 = por %p99, %p100
    %p102 = scmp.ne.s32.totalorder %s93, %s94
    %p103 = scmp.eq.s32.totalorder %s15, 0
    %p104 = por %p102, %p103
    %p105 = scmp.ne.s32.totalorder %s93, %s94
    %p106 = scmp.eq.s32.totalorder %s16, 1
    %p107 = por %p105, %p106
    %p109 = scmp.ne.s32.totalorder %s94, %s108
    %p110 = scmp.eq.s32.totalorder %s16, 0
    %p111 = por %p109, %p110
    %s112 = ssub.s32 %s10, %s17
    %p113 = scmp.eq.s32.totalorder %s112, 0
    %s115 = sadd.s32 %s114, 1
    %s116 = scalar_select %p113, %s114, %s115
    %p119 = pneg %p113
    %p120 = scmp.eq.s32.totalorder %s10, 1
    %p121 = por %p119, %p120
    %p122 = scmp.ne.s32.totalorder %s114, %s117
    %p123 = scmp.eq.s32.totalorder %s10, 0
    %p124 = por %p122, %p123
    %p125 = scmp.ne.s32.totalorder %s114, %s117
    %p126 = scmp.eq.s32.totalorder %s15, 1
    %p127 = por %p125, %p126
    %p128 = scmp.ne.s32.totalorder %s117, %s118
    %p129 = scmp.eq.s32.totalorder %s15, 0
    %p130 = por %p128, %p129
    %p131 = scmp.ne.s32.totalorder %s117, %s118
    %p132 = scmp.eq.s32.totalorder %s16, 1
    %p133 = por %p131, %p132
    %p135 = scmp.ne.s32.totalorder %s118, %s134
    %p136 = scmp.eq.s32.totalorder %s16, 0
    %p137 = por %p135, %p136
    %p138 = scmp.le.s32.totalorder 1, %s10
    %p139 = scmp.lt.s32.totalorder %s10, 3
    %p140 = pnand %p138, %p139
    %p141 = pneg %p140
    // Predicated region
    $region9: #{tpu_custom_call.1} parent=5 // pred_check
      _
    $region10: #{tpu_custom_call.1} parent=5 // pred_check_branch
      %143 = sbr.rel (%p140) target = $region12
    $region11: #{tpu_custom_call.1} parent=5 // pred_region
      %s144 = ssub.s32 %s10, 1
      // Predicated region
      $region13: #{tpu_custom_call.1} parent=11 // pred_check
        %p145 = pneg %p57
      $region14: #{tpu_custom_call.1} parent=11 // pred_check_branch
        %147 = sbr.rel (%p145) target = $region16
      $region15: #{tpu_custom_call.1} parent=11 // pred_region
        _
      $region16: #{tpu_custom_call.1} parent=11 // pred_fallthru
        _
      // Predicated region
      $region17: #{tpu_custom_call.1} parent=11 // pred_check
        %p148 = pneg %p104
      $region18: #{tpu_custom_call.1} parent=11 // pred_check_branch
        %150 = sbr.rel (%p148) target = $region20
      $region19: #{tpu_custom_call.1} parent=11 // pred_region
        _
      $region20: #{tpu_custom_call.1} parent=11 // pred_fallthru
        _
    $region12: #{tpu_custom_call.1} parent=5 // pred_fallthru
      _
    %p151 = scmp.lt.s32.totalorder %s10, 2
    // Predicated region
    $region21: #{tpu_custom_call.1} parent=5 // pred_check
      %p152 = pneg %p151
    $region22: #{tpu_custom_call.1} parent=5 // pred_check_branch
      %154 = sbr.rel (%p152) target = $region24
    $region23: #{tpu_custom_call.1} parent=5 // pred_region
      // Predicated region
      $region25: #{tpu_custom_call.1} parent=23 // pred_check
        %p155 = pneg %p30
      $region26: #{tpu_custom_call.1} parent=23 // pred_check_branch
        %157 = sbr.rel (%p155) target = $region28
      $region27: #{tpu_custom_call.1} parent=23 // pred_region
        %p158 = scmp.lt.s32.totalorder %s10, 1
        %s159 = scalar_select %p158, %s10, 1
        %s160 = smul.addr %s159, 8
        %s161 = smul.addr %s160, 8
        %s162 = scalar_lea.vmem %s0, %s161
      $region28: #{tpu_custom_call.1} parent=23 // pred_fallthru
        _
      // Predicated region
      $region29: #{tpu_custom_call.1} parent=23 // pred_check
        %p163 = pneg %p77
      $region30: #{tpu_custom_call.1} parent=23 // pred_check_branch
        %165 = sbr.rel (%p163) target = $region32
      $region31: #{tpu_custom_call.1} parent=23 // pred_region
        %p166 = scmp.lt.s32.totalorder %s10, 1
        %s167 = scalar_select %p166, %s10, 1
        %s168 = smul.addr %s167, 8
        %s169 = smul.addr %s168, 8
        %s170 = scalar_lea.vmem %s2, %s169
      $region32: #{tpu_custom_call.1} parent=23 // pred_fallthru
        _
    $region24: #{tpu_custom_call.1} parent=5 // pred_fallthru
      _
    %p171 = scmp.le.s32.totalorder 1, %s10
    %p172 = scmp.lt.s32.totalorder %s10, 3
    %p173 = pnand %p171, %p172
    %p174 = pneg %p173
    // Predicated region
    $region33: #{tpu_custom_call.1} parent=5 // pred_check
      _
    $region34: #{tpu_custom_call.1} parent=5 // pred_check_branch
      %176 = sbr.rel (%p173) target = $region36
    $region35: #{tpu_custom_call.1} parent=5 // pred_region
      %s177 = ssub.s32 %s10, 1
      %p178 = scmp.lt.s32.totalorder %s15, 1
      %s179 = scalar_select %p178, %s15, 1
      %s180 = smul.addr %s179, 8
      %s181 = smul.addr %s180, 8
      %s182 = scalar_lea.vmem %s0, %s181
      %p183 = pneg %p36
      %p184 = pneg %p33
      %p185 = pneg %p57
      %p186 = pneg %p54
      %p187 = scmp.lt.s32.totalorder %s15, 1
      %s188 = scalar_select %p187, %s15, 1
      %s189 = smul.addr %s188, 8
      %s190 = smul.addr %s189, 8
      %s191 = scalar_lea.vmem %s2, %s190
      %p192 = pneg %p83
      %p193 = pneg %p80
      %p194 = pneg %p104
      %p195 = pneg %p101
      %p196 = pneg %p130
      %p197 = pneg %p127
      %p198 = scmp.lt.s32.totalorder %s15, 1
      %s199 = scalar_select %p198, %s15, 1
      %s200 = smul.addr %s199, 8
      %s201 = smul.addr %s200, 4
      %s202 = scalar_lea.vmem %s4, %s201
      %p203 = scmp.lt.s32.totalorder %s15, 1
      %s204 = scalar_select %p203, %s15, 1
      %s205 = smul.addr %s204, 8
      %s206 = smul.addr %s205, 8
      %s207 = scalar_lea.vmem %s0, %s206
      %p208 = scmp.lt.s32.totalorder %s15, 1
      %s209 = scalar_select %p208, %s15, 1
      %s210 = smul.addr %s209, 8
      %s211 = smul.addr %s210, 8
      %s212 = scalar_lea.vmem %s2, %s211
      %p213 = scmp.lt.s32.totalorder %s15, 1
      %s214 = scalar_select %p213, %s15, 1
      %s215 = smul.addr %s214, 8
      %s216 = smul.addr %s215, 4
      %s217 = scalar_lea.vmem %s4, %s216
      %v219 = vld [vmem:[%s207] sm:$0xff]
      %v220 = vld [vmem:[%s207 + $0x8] sm:$0xff]
      %v221 = vld [vmem:[%s207 + $0x10] sm:$0xff]
      %v222 = vld [vmem:[%s207 + $0x18] sm:$0xff]
      %v223 = vld [vmem:[%s207 + $0x20] sm:$0xff]
      %v224 = vld [vmem:[%s207 + $0x28] sm:$0xff]
      %v225 = vld [vmem:[%s207 + $0x30] sm:$0xff]
      %v226 = vld [vmem:[%s207 + $0x38] sm:$0xff]
      %v227 = vpack.c.bf16 %v220, %v219
      %v228 = vpack.c.bf16 %v222, %v221
      %v229 = vpack.c.bf16 %v224, %v223
      %v230 = vpack.c.bf16 %v226, %v225
      %v231 = vld [vmem:[%s3] sm:$0xf]
      %v232 = vld [vmem:[%s3 + $0x4] sm:$0xf]
      %v233 = vld [vmem:[%s1] sm:$0xff]
      %v234 = vld [vmem:[%s1 + $0x8] sm:$0xff]
      %v235 = vld [vmem:[%s1 + $0x10] sm:$0xff]
      %v236 = vld [vmem:[%s1 + $0x18] sm:$0xff]
      %v237 = vld [vmem:[%s1 + $0x20] sm:$0xff]
      %v238 = vld [vmem:[%s1 + $0x28] sm:$0xff]
      %v239 = vld [vmem:[%s1 + $0x30] sm:$0xff]
      %v240 = vld [vmem:[%s1 + $0x38] sm:$0xff]
      %v243 = vunpack.c.l.b16 %v231
      %v244 = vunpack.c.l.b16 %v232
      %v245 = vpack.c.b16 %v244, %v243
      %vm247 = vcmask 130048
      %v249 = vsel %vm247, %v227, 0
      %v252 = vsel %vm247, %v228, 0
      %v255 = vsel %vm247, %v229, 0
      %v258 = vsel %vm247, %v230, 0
      %260 = vmatprep.subr.bf16.mxu0 0
      %261 = vmatpush1.bf16.msra.mxu0 %v245
      %262 = vmatprep.subr.bf16.mxu0 0
      %263 = vmatpush1.bf16.msra.mxu0 0
      %264 = vmatprep.subr.bf16.mxu0 0
      %265 = vmatpush1.bf16.msra.mxu0 0
      %266 = vmatprep.subr.bf16.mxu0 0
      %267 = vmatpush1.bf16.msra.mxu0 0
      %268 = vmatprep.subr.bf16.mxu0 0
      %269 = vmatpush1.bf16.msra.mxu0 0
      %270 = vmatprep.subr.bf16.mxu0 0
      %271 = vmatpush1.bf16.msra.mxu0 0
      %272 = vmatprep.subr.bf16.mxu0 0
      %273 = vmatpush1.bf16.msra.mxu0 0
      %274 = vmatprep.subr.bf16.mxu0 0
      %275 = vmatpush1.bf16.msra.mxu0 0
      %276 = vmatprep.subr.bf16.mxu0 0
      %277 = vmatpush1.bf16.msra.mxu0 0
      %278 = vmatprep.subr.bf16.mxu0 0
      %279 = vmatpush1.bf16.msra.mxu0 0
      %280 = vmatprep.subr.bf16.mxu0 0
      %281 = vmatpush1.bf16.msra.mxu0 0
      %282 = vmatprep.subr.bf16.mxu0 0
      %283 = vmatpush1.bf16.msra.mxu0 0
      %284 = vmatprep.subr.bf16.mxu0 0
      %285 = vmatpush1.bf16.msra.mxu0 0
      %286 = vmatprep.subr.bf16.mxu0 0
      %287 = vmatpush1.bf16.msra.mxu0 0
      %288 = vmatprep.subr.bf16.mxu0 0
      %289 = vmatpush1.bf16.msra.mxu0 0
      %290 = vmatprep.subr.bf16.mxu0 0
      %291 = vmatpush1.bf16.msra.mxu0 0
      %292 = vmatprep.mubr.bf16.mxu0 0
      %293 = vmatmul.mubr.bf16.gmra.mrb[0].mxu0 %v249
      %v294 = vpop.f32.mrb[0].mxu0
      %v295 = vadd.f32 %v233, %v294
      %v296 = vpop.f32.mrb[0].mxu0
      %v297 = vpop.f32.mrb[0].mxu0
      %v298 = vadd.f32 %v234, %v297
      %v299 = vpop.f32.mrb[0].mxu0
      %300 = vmatprep.mubr.bf16.mxu0 0
      %301 = vmatmul.mubr.bf16.gmra.mrb[0].mxu0 %v252
      %v302 = vpop.f32.mrb[0].mxu0
      %v303 = vadd.f32 %v235, %v302
      %v304 = vpop.f32.mrb[0].mxu0
      %v305 = vpop.f32.mrb[0].mxu0
      %v306 = vadd.f32 %v236, %v305
      %v307 = vpop.f32.mrb[0].mxu0
      %308 = vmatprep.mubr.bf16.mxu0 0
      %309 = vmatmul.mubr.bf16.gmra.mrb[0].mxu0 %v255
      %v310 = vpop.f32.mrb[0].mxu0
      %v311 = vadd.f32 %v237, %v310
      %v312 = vpop.f32.mrb[0].mxu0
      %v313 = vpop.f32.mrb[0].mxu0
      %v314 = vadd.f32 %v238, %v313
      %v315 = vpop.f32.mrb[0].mxu0
      %316 = vmatprep.mubr.bf16.mxu0 0
      %317 = vmatmul.mubr.bf16.gmra.mrb[0].mxu0 %v258
      %v318 = vpop.f32.mrb[0].mxu0
      %v319 = vadd.f32 %v239, %v318
      %v320 = vpop.f32.mrb[0].mxu0
      %v321 = vpop.f32.mrb[0].mxu0
      %v322 = vadd.f32 %v240, %v321
      %v323 = vpop.f32.mrb[0].mxu0
      %324 = vdwg.mxu0
      %v325 = vld [vmem:[%s212] sm:$0xff]
      %v326 = vld [vmem:[%s212 + $0x8] sm:$0xff]
      %v327 = vld [vmem:[%s212 + $0x10] sm:$0xff]
      %v328 = vld [vmem:[%s212 + $0x18] sm:$0xff]
      %v329 = vld [vmem:[%s212 + $0x20] sm:$0xff]
      %v330 = vld [vmem:[%s212 + $0x28] sm:$0xff]
      %v331 = vld [vmem:[%s212 + $0x30] sm:$0xff]
      %v332 = vld [vmem:[%s212 + $0x38] sm:$0xff]
      %334 = vset.pattern.permute.xlu0 0
      %335 = vperm.xlu0 %334, %v325
      %v336 = vpop.permute.xlu0 %335
      %339 = vset.pattern.permute.xlu0 0
      %340 = vperm.xlu0 %339, %v326
      %v341 = vpop.permute.xlu0 %340
      %344 = vset.pattern.permute.xlu0 0
      %345 = vperm.xlu0 %344, %v327
      %v346 = vpop.permute.xlu0 %345
      %349 = vset.pattern.permute.xlu0 0
      %350 = vperm.xlu0 %349, %v328
      %v351 = vpop.permute.xlu0 %350
      %354 = vset.pattern.permute.xlu0 0
      %355 = vperm.xlu0 %354, %v329
      %v356 = vpop.permute.xlu0 %355
      %359 = vset.pattern.permute.xlu0 0
      %360 = vperm.xlu0 %359, %v330
      %v361 = vpop.permute.xlu0 %360
      %364 = vset.pattern.permute.xlu0 0
      %365 = vperm.xlu0 %364, %v331
      %v366 = vpop.permute.xlu0 %365
      %369 = vset.pattern.permute.xlu0 0
      %370 = vperm.xlu0 %369, %v332
      %v371 = vpop.permute.xlu0 %370
      %v373 = vmul.f32 %v295, %v336
      %v374 = vmul.f32 %v298, %v341
      %v375 = vmul.f32 %v303, %v346
      %v376 = vmul.f32 %v306, %v351
      %v377 = vmul.f32 %v311, %v356
      %v378 = vmul.f32 %v314, %v361
      %v379 = vmul.f32 %v319, %v366
      %v380 = vmul.f32 %v322, %v371
      %v381 = vpack.c.bf16 %v374, %v373
      %v382 = vpack.c.bf16 %v376, %v375
      %v383 = vpack.c.bf16 %v378, %v377
      %v384 = vpack.c.bf16 %v380, %v379
      %v389 = vunpack.c.l.b16 %v381
      %v390 = vunpack.c.h.b16 %v381
      %v391 = vunpack.c.l.b16 %v382
      %v392 = vunpack.c.h.b16 %v382
      %v393 = vunpack.c.l.b16 %v383
      %v394 = vunpack.c.h.b16 %v383
      %v395 = vunpack.c.l.b16 %v384
      %v396 = vunpack.c.h.b16 %v384
      %v397 = vpack.c.b16 %v389, %v389
      %v398 = vpack.c.b16 %v390, %v390
      %v399 = vpack.c.b16 %v391, %v391
      %v400 = vpack.c.b16 %v392, %v392
      %v401 = vpack.c.b16 %v393, %v393
      %v402 = vpack.c.b16 %v394, %v394
      %v403 = vpack.c.b16 %v395, %v395
      %v404 = vpack.c.b16 %v396, %v396
      %vm413 = vcmask 257024
      %414 = vst.msk [vmem:[%s217] sm:$0xf] %vm413, %v397
      %415 = vst.msk [vmem:[%s217 + $0x4] sm:$0xf] %vm413, %v398
      %416 = vst.msk [vmem:[%s217 + $0x8] sm:$0xf] %vm413, %v399
      %417 = vst.msk [vmem:[%s217 + $0xc] sm:$0xf] %vm413, %v400
      %418 = vst.msk [vmem:[%s217 + $0x10] sm:$0xf] %vm413, %v401
      %419 = vst.msk [vmem:[%s217 + $0x14] sm:$0xf] %vm413, %v402
      %420 = vst.msk [vmem:[%s217 + $0x18] sm:$0xf] %vm413, %v403
      %421 = vst.msk [vmem:[%s217 + $0x1c] sm:$0xf] %vm413, %v404
      %p422 = scmp.lt.s32.totalorder %s15, 1
      %s423 = scalar_select %p422, %s15, 1
      %s424 = smul.addr %s423, 8
      %s425 = smul.addr %s424, 4
      %s426 = scalar_lea.vmem %s4, %s425
      // Predicated region
      $region37: #{tpu_custom_call.1} parent=35 // pred_check
        %p427 = pneg %p127
      $region38: #{tpu_custom_call.1} parent=35 // pred_check_branch
        %429 = sbr.rel (%p427) target = $region40
      $region39: #{tpu_custom_call.1} parent=35 // pred_region
        _
      $region40: #{tpu_custom_call.1} parent=35 // pred_fallthru
        _
    $region36: #{tpu_custom_call.1} parent=5 // pred_fallthru
      _
    %p430 = scmp.le.s32.totalorder 2, %s10
    // Predicated region
    $region41: #{tpu_custom_call.1} parent=5 // pred_check
      %p431 = pneg %p430
    $region42: #{tpu_custom_call.1} parent=5 // pred_check_branch
      %433 = sbr.rel (%p431) target = $region44
    $region43: #{tpu_custom_call.1} parent=5 // pred_region
      %s434 = ssub.s32 %s10, 2
      // Predicated region
      $region45: #{tpu_custom_call.1} parent=43 // pred_check
        %p435 = pneg %p133
      $region46: #{tpu_custom_call.1} parent=43 // pred_check_branch
        %437 = sbr.rel (%p435) target = $region48
      $region47: #{tpu_custom_call.1} parent=43 // pred_region
        %p438 = scmp.lt.s32.totalorder %s16, 1
        %s439 = scalar_select %p438, %s16, 1
        %s440 = smul.addr %s439, 8
        %s441 = smul.addr %s440, 4
        %s442 = scalar_lea.vmem %s4, %s441
      $region48: #{tpu_custom_call.1} parent=43 // pred_fallthru
        _
    $region44: #{tpu_custom_call.1} parent=5 // pred_fallthru
      _
  $region6: #{tpu_custom_call.1} parent=0 // loop_footer
    %s14 = sadd.s32 1, %s10
  $region7: #{tpu_custom_call.1} parent=0 // loop_footer_branch
    %9 = sbr.rel target = $region3
  $region8: #{tpu_custom_call.1} parent=0 // loop_exit
    _

</llo_original>
